<compile_context>
chip_gen: v7x
topology: tpu7x:2x2x1
jax: 0.10.0
libtpu: 0.0.40
codegen_flags: <defaults>
</compile_context>

<pallas_src>
import jax
import jax.numpy as jnp
from jax.experimental import pallas as pl
from jax.experimental.pallas import tpu as pltpu

_BN_EPS = 1e-5
_LEAKY_SLOPE = 0.2


# ----------------------------------------------------------------------------
# Fused kernel: conv1x1+bias+leaky -> conv1x1+BN+leaky -> conv1x1
# ----------------------------------------------------------------------------
def _pixel_disc_kernel(x_ref, w1_ref, b1_ref, w2_ref, s2_ref, b2_ref, w3_ref,
                       o_ref):
    # x_ref : (Cin, T)    f32  spatial tile of one image (channels on sublanes)
    # w1    : (ndf, Cin)  bf16
    # b1    : (ndf, 1)    f32  conv1 bias (per channel, broadcast over lanes)
    # w2    : (2ndf, ndf) bf16
    # s2,b2 : (2ndf, 1)   f32  folded inference BatchNorm scale / bias
    # w3    : (1, 2ndf)   bf16
    # o_ref : (1, T)      f32  lane-dense per-pixel logits
    x = x_ref[...].astype(jnp.bfloat16)

    # layer 1: 1x1 conv + bias + LeakyReLU(0.2)   (bf16 MXU, f32 accumulate)
    h = jnp.dot(w1_ref[...], x, preferred_element_type=jnp.float32)
    h = h + b1_ref[...]
    h = jnp.maximum(h, _LEAKY_SLOPE * h)

    # layer 2: 1x1 conv (no bias) + folded BatchNorm + LeakyReLU(0.2)
    h = jnp.dot(w2_ref[...], h.astype(jnp.bfloat16),
                preferred_element_type=jnp.float32)
    h = h * s2_ref[...] + b2_ref[...]
    h = jnp.maximum(h, _LEAKY_SLOPE * h)

    # layer 3: 1x1 conv (no bias) -> one logit per pixel, lane-dense row
    out = jnp.dot(w3_ref[...], h.astype(jnp.bfloat16),
                  preferred_element_type=jnp.float32)
    o_ref[...] = out.astype(o_ref.dtype)


def pixel_discriminator(x_nchw, params, *, max_tile_hw=2048):
    """x_nchw: (N, Cin, H, W) f32 -> (N, 1, H, W) f32 logits."""
    N, C, H, W = x_nchw.shape
    w1, b1 = params["w1"], params["b1"]
    w2, s2, b2 = params["w2"], params["s2"], params["b2"]
    w3 = params["w3"]
    ndf = w1.shape[0]

    hw = H * W
    # Pure reshape (no relayout): NCHW -> (N, C, H*W); spatial axis on lanes.
    x = x_nchw.reshape(N, C, hw)

    # Lane tile: multiple of 128, at most max_tile_hw.  Ragged spatial edges
    # are handled by Pallas (masked writeback on the output tile).
    tile_hw = min(max_tile_hw, pl.cdiv(hw, 128) * 128)
    grid = (N, pl.cdiv(hw, tile_hw))

    out = pl.pallas_call(
        _pixel_disc_kernel,
        out_shape=jax.ShapeDtypeStruct((N, 1, hw), jnp.float32),
        grid_spec=pltpu.PrefetchScalarGridSpec(
            num_scalar_prefetch=0,
            grid=grid,
            in_specs=[
                pl.BlockSpec((None, C, tile_hw), lambda n, s: (n, 0, s)),
                pl.BlockSpec((ndf, C), lambda n, s: (0, 0)),
                pl.BlockSpec((ndf, 1), lambda n, s: (0, 0)),
                pl.BlockSpec((2 * ndf, ndf), lambda n, s: (0, 0)),
                pl.BlockSpec((2 * ndf, 1), lambda n, s: (0, 0)),
                pl.BlockSpec((2 * ndf, 1), lambda n, s: (0, 0)),
                pl.BlockSpec((1, 2 * ndf), lambda n, s: (0, 0)),
            ],
            out_specs=pl.BlockSpec((None, 1, tile_hw), lambda n, s: (n, 0, s)),
        ),
        compiler_params=pltpu.CompilerParams(
            dimension_semantics=("parallel", "parallel"),
        ),
    )(x, w1, b1, w2, s2, b2, w3)

    return out.reshape(N, 1, H, W)


# ----------------------------------------------------------------------------
# Deterministic synthetic parameters (matching the PyTorch layer structure)
# ----------------------------------------------------------------------------
# TODO(synk): BatchNorm2d is implemented in inference mode (running stats
# mean=0, var=1, gamma=1, beta=0) folded into a per-channel scale/bias;
# training-mode batch statistics are not computed in the kernel.
def init_params(key, input_nc=4, ndf=64):
    k1w, k1b, k2w, k3w = jax.random.split(key, 4)

    # conv1: Conv2d(input_nc, ndf, 1)  (default bias=True), weight as (out, in)
    w1 = jax.random.normal(k1w, (ndf, input_nc), jnp.float32) * 0.02
    b1 = jax.random.normal(k1b, (ndf,), jnp.float32) * 0.01

    # conv2: Conv2d(ndf, 2*ndf, 1, bias=False)
    w2 = jax.random.normal(k2w, (2 * ndf, ndf), jnp.float32) * 0.02
    gamma = jnp.ones((2 * ndf,), jnp.float32)
    beta = jnp.zeros((2 * ndf,), jnp.float32)
    mean = jnp.zeros((2 * ndf,), jnp.float32)
    var = jnp.ones((2 * ndf,), jnp.float32)
    s2 = gamma / jnp.sqrt(var + _BN_EPS)
    b2 = beta - s2 * mean

    # conv3: Conv2d(2*ndf, 1, 1, bias=False)
    w3 = jax.random.normal(k3w, (1, 2 * ndf), jnp.float32) * 0.02

    return {
        "w1": w1.astype(jnp.bfloat16),
        "b1": b1.reshape(ndf, 1).astype(jnp.float32),
        "w2": w2.astype(jnp.bfloat16),
        "s2": s2.reshape(2 * ndf, 1).astype(jnp.float32),
        "b2": b2.reshape(2 * ndf, 1).astype(jnp.float32),
        "w3": w3.astype(jnp.bfloat16),
    }


# Pure-JAX reference (f32) for a sanity check.
def _reference(x_nchw, params):
    N, C, H, W = x_nchw.shape
    xf = x_nchw.reshape(N, C, -1).astype(jnp.float32)
    w1 = params["w1"].astype(jnp.float32)
    w2 = params["w2"].astype(jnp.float32)
    w3 = params["w3"].astype(jnp.float32)
    h = jnp.einsum("oc,ncp->nop", w1, xf) + params["b1"][None]
    h = jnp.where(h >= 0, h, _LEAKY_SLOPE * h)
    h = jnp.einsum("oc,ncp->nop", w2, h)
    h = h * params["s2"][None] + params["b2"][None]
    h = jnp.where(h >= 0, h, _LEAKY_SLOPE * h)
    out = jnp.einsum("oc,ncp->nop", w3, h)
    return out.reshape(N, 1, H, W)


if __name__ == "__main__":
    key = jax.random.PRNGKey(0)
    kx, kp = jax.random.split(key)

    # small shapes: batch=2, input_nc=4, spatial=16x16, ndf=64
    N, C, H, W = 2, 4, 16, 16
    x = jax.random.normal(kx, (N, C, H, W), jnp.float32)
    params = init_params(kp, input_nc=C, ndf=64)

    out = jax.jit(pixel_discriminator)(x, params)
    out = jax.block_until_ready(out)

    assert out.shape == (N, 1, H, W), out.shape
    assert bool(jnp.all(jnp.isfinite(out)))

    ref = _reference(x, params)
    assert bool(jnp.allclose(out, ref, rtol=5e-2, atol=1e-3)), (
        float(jnp.max(jnp.abs(out - ref))))
    print("KERNEL_OK")
</pallas_src>

<mosaic_0001>
module attributes {stable_mosaic.version = 11 : i64} {
  func.func @_pixel_disc_kernel(%arg0: i32, %arg1: i32, %arg2: memref<1x4x256xf32, #tpu.memory_space<vmem>>, %arg3: memref<64x4xbf16, #tpu.memory_space<vmem>>, %arg4: memref<64x1xf32, #tpu.memory_space<vmem>>, %arg5: memref<128x64xbf16, #tpu.memory_space<vmem>>, %arg6: memref<128x1xf32, #tpu.memory_space<vmem>>, %arg7: memref<128x1xf32, #tpu.memory_space<vmem>>, %arg8: memref<1x128xbf16, #tpu.memory_space<vmem>>, %arg9: memref<1x1x256xf32, #tpu.memory_space<vmem>>) attributes {dimension_semantics = [#tpu.dimension_semantics<parallel>, #tpu.dimension_semantics<parallel>], iteration_bounds = array<i64: 2, 1>, scalar_prefetch = 0 : i64, scratch_operands = 0 : i64, tpu.core_type = #tpu.core_type<tc>, window_params = [{transform_indices = @transform_0, window_bounds = array<i64: 1, 4, 256>}, {pipeline_mode = #tpu.pipeline_mode<synchronous>, transform_indices = @transform_1, window_bounds = array<i64: 64, 4>}, {pipeline_mode = #tpu.pipeline_mode<synchronous>, transform_indices = @transform_2, window_bounds = array<i64: 64, 1>}, {pipeline_mode = #tpu.pipeline_mode<synchronous>, transform_indices = @transform_3, window_bounds = array<i64: 128, 64>}, {pipeline_mode = #tpu.pipeline_mode<synchronous>, transform_indices = @transform_4, window_bounds = array<i64: 128, 1>}, {pipeline_mode = #tpu.pipeline_mode<synchronous>, transform_indices = @transform_5, window_bounds = array<i64: 128, 1>}, {pipeline_mode = #tpu.pipeline_mode<synchronous>, transform_indices = @transform_6, window_bounds = array<i64: 1, 128>}, {transform_indices = @transform_7, window_bounds = array<i64: 1, 1, 256>}]} {
    %c0 = arith.constant 0 : index
    %c0_0 = arith.constant 0 : index
    %c0_1 = arith.constant 0 : index
    %0 = vector.load %arg2[%c0, %c0_0, %c0_1] : memref<1x4x256xf32, #tpu.memory_space<vmem>>, vector<1x4x256xf32>
    %1 = vector.shape_cast %0 : vector<1x4x256xf32> to vector<4x256xf32>
    %2 = arith.truncf %1 : vector<4x256xf32> to vector<4x256xbf16>
    %c0_2 = arith.constant 0 : index
    %c0_3 = arith.constant 0 : index
    %3 = vector.load %arg3[%c0_2, %c0_3] : memref<64x4xbf16, #tpu.memory_space<vmem>>, vector<64x4xbf16>
    %cst = arith.constant dense<0.000000e+00> : vector<64x256xf32>
    %4 = tpu.matmul %3, %2, %cst {dimension_numbers = #tpu.dot_dimension_numbers<[1], [0], [0], [1], [0, 0, 1, 1], [], []>} : vector<64x4xbf16>, vector<4x256xbf16>, vector<64x256xf32> -> vector<64x256xf32>
    %c0_4 = arith.constant 0 : index
    %c0_5 = arith.constant 0 : index
    %5 = vector.load %arg4[%c0_4, %c0_5] : memref<64x1xf32, #tpu.memory_space<vmem>>, vector<64x1xf32>
    %6 = vector.broadcast %5 : vector<64x1xf32> to vector<64x256xf32>
    %7 = arith.addf %4, %6 : vector<64x256xf32>
    %cst_6 = arith.constant 2.000000e-01 : f32
    %8 = vector.broadcast %cst_6 : f32 to vector<64x256xf32>
    %9 = arith.mulf %8, %7 : vector<64x256xf32>
    %10 = arith.maximumf %7, %9 : vector<64x256xf32>
    %c0_7 = arith.constant 0 : index
    %c0_8 = arith.constant 0 : index
    %11 = vector.load %arg5[%c0_7, %c0_8] : memref<128x64xbf16, #tpu.memory_space<vmem>>, vector<128x64xbf16>
    %12 = arith.truncf %10 : vector<64x256xf32> to vector<64x256xbf16>
    %cst_9 = arith.constant dense<0.000000e+00> : vector<128x256xf32>
    %13 = tpu.matmul %11, %12, %cst_9 {dimension_numbers = #tpu.dot_dimension_numbers<[1], [0], [0], [1], [0, 0, 1, 1], [], []>} : vector<128x64xbf16>, vector<64x256xbf16>, vector<128x256xf32> -> vector<128x256xf32>
    %c0_10 = arith.constant 0 : index
    %c0_11 = arith.constant 0 : index
    %14 = vector.load %arg6[%c0_10, %c0_11] : memref<128x1xf32, #tpu.memory_space<vmem>>, vector<128x1xf32>
    %15 = vector.broadcast %14 : vector<128x1xf32> to vector<128x256xf32>
    %16 = arith.mulf %13, %15 : vector<128x256xf32>
    %c0_12 = arith.constant 0 : index
    %c0_13 = arith.constant 0 : index
    %17 = vector.load %arg7[%c0_12, %c0_13] : memref<128x1xf32, #tpu.memory_space<vmem>>, vector<128x1xf32>
    %18 = vector.broadcast %17 : vector<128x1xf32> to vector<128x256xf32>
    %19 = arith.addf %16, %18 : vector<128x256xf32>
    %cst_14 = arith.constant 2.000000e-01 : f32
    %20 = vector.broadcast %cst_14 : f32 to vector<128x256xf32>
    %21 = arith.mulf %20, %19 : vector<128x256xf32>
    %22 = arith.maximumf %19, %21 : vector<128x256xf32>
    %c0_15 = arith.constant 0 : index
    %c0_16 = arith.constant 0 : index
    %23 = vector.load %arg8[%c0_15, %c0_16] : memref<1x128xbf16, #tpu.memory_space<vmem>>, vector<1x128xbf16>
    %24 = arith.truncf %22 : vector<128x256xf32> to vector<128x256xbf16>
    %cst_17 = arith.constant dense<0.000000e+00> : vector<1x256xf32>
    %25 = tpu.matmul %23, %24, %cst_17 {dimension_numbers = #tpu.dot_dimension_numbers<[1], [0], [0], [1], [0, 0, 1, 1], [], []>} : vector<1x128xbf16>, vector<128x256xbf16>, vector<1x256xf32> -> vector<1x256xf32>
    %c0_18 = arith.constant 0 : index
    %c0_19 = arith.constant 0 : index
    %c0_20 = arith.constant 0 : index
    %26 = vector.load %arg9[%c0_18, %c0_19, %c0_20] : memref<1x1x256xf32, #tpu.memory_space<vmem>>, vector<1x1x256xf32>
    %27 = vector.shape_cast %26 : vector<1x1x256xf32> to vector<1x256xf32>
    %28 = vector.shape_cast %25 : vector<1x256xf32> to vector<1x1x256xf32>
    tpu.vector_store %arg9[%c0_18, %c0_19, %c0_20], %28 {strides = array<i32>} : memref<1x1x256xf32, #tpu.memory_space<vmem>>, vector<1x1x256xf32>,
    return
  }
  func.func @transform_0(%arg0: i32, %arg1: i32) -> (i32, i32, i32) {
    %c0_i32 = arith.constant 0 : i32
    %c0_i32_0 = arith.constant 0 : i32
    return %arg0, %c0_i32, %arg1 : i32, i32, i32
  }
  func.func @transform_1(%arg0: i32, %arg1: i32) -> (i32, i32) {
    %c0_i32 = arith.constant 0 : i32
    %c0_i32_0 = arith.constant 0 : i32
    %c0_i32_1 = arith.constant 0 : i32
    return %c0_i32, %c0_i32_0 : i32, i32
  }
  func.func @transform_2(%arg0: i32, %arg1: i32) -> (i32, i32) {
    %c0_i32 = arith.constant 0 : i32
    %c0_i32_0 = arith.constant 0 : i32
    %c0_i32_1 = arith.constant 0 : i32
    return %c0_i32, %c0_i32_0 : i32, i32
  }
  func.func @transform_3(%arg0: i32, %arg1: i32) -> (i32, i32) {
    %c0_i32 = arith.constant 0 : i32
    %c0_i32_0 = arith.constant 0 : i32
    %c0_i32_1 = arith.constant 0 : i32
    return %c0_i32, %c0_i32_0 : i32, i32
  }
  func.func @transform_4(%arg0: i32, %arg1: i32) -> (i32, i32) {
    %c0_i32 = arith.constant 0 : i32
    %c0_i32_0 = arith.constant 0 : i32
    %c0_i32_1 = arith.constant 0 : i32
    return %c0_i32, %c0_i32_0 : i32, i32
  }
  func.func @transform_5(%arg0: i32, %arg1: i32) -> (i32, i32) {
    %c0_i32 = arith.constant 0 : i32
    %c0_i32_0 = arith.constant 0 : i32
    %c0_i32_1 = arith.constant 0 : i32
    return %c0_i32, %c0_i32_0 : i32, i32
  }
  func.func @transform_6(%arg0: i32, %arg1: i32) -> (i32, i32) {
    %c0_i32 = arith.constant 0 : i32
    %c0_i32_0 = arith.constant 0 : i32
    %c0_i32_1 = arith.constant 0 : i32
    return %c0_i32, %c0_i32_0 : i32, i32
  }
  func.func @transform_7(%arg0: i32, %arg1: i32) -> (i32, i32, i32) {
    %c0_i32 = arith.constant 0 : i32
    %c0_i32_0 = arith.constant 0 : i32
    return %arg0, %c0_i32, %arg1 : i32, i32, i32
  }
}

</mosaic_0001>

<llo_original>
// kernel: pixel_discriminator.1
$region0: #{pixel_discriminator.1}
  #allocation0 [shape = 'u32[]', space=smem, size = 0x4, offset = 0x4, fixed_abs, tag = 'smem constant byte address 0x4 - core index']
  #allocation1 [shape = 'u32[144,128]{1,0:T(1,128)}', space=vmem, size = 0x12000, scoped, tag = 'internal scratch']
  %s0 = inlined_call_operand.vmem [shape: f32[2,4,256], index: 0, kind: input, shape index: {}]
  %s1 = inlined_call_operand.vmem [shape: bf16[64,4], index: 1, kind: input, shape index: {}]
  %s2 = inlined_call_operand.vmem [shape: f32[64,1], index: 2, kind: input, shape index: {}]
  %s3 = inlined_call_operand.vmem [shape: bf16[128,64], index: 3, kind: input, shape index: {}]
  %s4 = inlined_call_operand.vmem [shape: f32[128,1], index: 4, kind: input, shape index: {}]
  %s5 = inlined_call_operand.vmem [shape: f32[128,1], index: 5, kind: input, shape index: {}]
  %s6 = inlined_call_operand.vmem [shape: bf16[1,128], index: 6, kind: input, shape index: {}]
  %s7 = inlined_call_operand.vmem [shape: f32[2,1,256], index: 7, kind: output, shape index: {}]
  %s8 = sld [smem:[#allocation0]]
  $region61: #{pixel_discriminator.1} parent=0
    _
  %s10 = ssub.s32 1, %s8
  %s11 = scalar_select 0, %s10, %s8
  loop: start=0, step=1, limit=4
  $region2: #{pixel_discriminator.1} parent=0 // loop_pre_header
    _
  $region3: #{pixel_discriminator.1} parent=0 // loop_header
    %s13 = sphi 0, %s17
    %p14 = scmp.ge.s32.totalorder %s13, 4
    %s20 = sphi 0, %s32
    %s21 = sphi 0, %s28
    %s22 = sphi 0, %s20
    %s23 = sphi 0, %s21
    %s24 = sphi 0, %s22
    %s25 = sphi 0, %s23
    %s37 = sphi 0, %s39
    %s40 = sphi 0, %s37
    %s41 = sphi 0, %s40
    %s57 = sphi 0, %s41
    %s61 = sphi 0, %s61
    %s63 = sphi 0, %s61
    %s64 = sphi 0, %s63
    %s78 = sphi 0, %s64
    %s82 = sphi 0, %s82
    %s84 = sphi 0, %s82
    %s85 = sphi 0, %s84
    %s99 = sphi 0, %s85
    %s103 = sphi 0, %s103
    %s105 = sphi 0, %s103
    %s106 = sphi 0, %s105
    %s120 = sphi 0, %s106
    %s124 = sphi 0, %s124
    %s126 = sphi 0, %s124
    %s127 = sphi 0, %s126
    %s141 = sphi 0, %s127
    %s145 = sphi 0, %s145
    %s147 = sphi 0, %s145
    %s148 = sphi 0, %s147
    %s162 = sphi 0, %s148
    %s166 = sphi 0, %s166
    %s168 = sphi 0, %s166
    %s169 = sphi 0, %s168
    %s183 = sphi 0, %s169
    %s191 = sphi 0, %s193
    %s194 = sphi 0, %s191
    %s195 = sphi 0, %s194
    %s211 = sphi 0, %s195
  $region4: #{pixel_discriminator.1} parent=0 // loop_header_branch
    %16 = sbr.rel (%p14) target = $region8
  $region5: #{pixel_discriminator.1} parent=0 // loop_body
    %s18 = ssub.s32 %s13, 1
    %s19 = ssub.s32 %s13, 2
    %s26 = sadd.s32 1, %s21
    %p27 = scmp.ge.s32.totalorder %s26, 1
    %s28 = scalar_select %p27, 0, %s26
    %s29 = sadd.s32 1, %s20
    %s30 = scalar_select %p27, %s29, %s20
    %p31 = scmp.ge.s32.totalorder %s30, 2
    %s32 = scalar_select %p31, 0, %s30
    %s33 = ssub.s32 %s20, %s32
    %s34 = ssub.s32 %s21, %s28
    %s35 = sor.u32 %s33, %s34
    %p36 = scmp.eq.s32.totalorder %s35, 0
    %s38 = sadd.s32 %s37, 1
    %s39 = scalar_select %p36, %s37, %s38
    %p42 = pneg %p36
    %p43 = scmp.eq.s32.totalorder %s13, 1
    %p44 = por %p42, %p43
    %p45 = scmp.ne.s32.totalorder %s37, %s40
    %p46 = scmp.eq.s32.totalorder %s13, 0
    %p47 = por %p45, %p46
    %p48 = scmp.ne.s32.totalorder %s37, %s40
    %p49 = scmp.eq.s32.totalorder %s18, 1
    %p50 = por %p48, %p49
    %p51 = scmp.ne.s32.totalorder %s40, %s41
    %p52 = scmp.eq.s32.totalorder %s18, 0
    %p53 = por %p51, %p52
    %p54 = scmp.ne.s32.totalorder %s40, %s41
    %p55 = scmp.eq.s32.totalorder %s19, 1
    %p56 = por %p54, %p55
    %p58 = scmp.ne.s32.totalorder %s41, %s57
    %p59 = scmp.eq.s32.totalorder %s19, 0
    %p60 = por %p58, %p59
    %s62 = sadd.s32 %s61, 1
    %p65 = scmp.eq.s32.totalorder %s13, 1
    %p66 = scmp.ne.s32.totalorder %s61, %s63
    %p67 = scmp.eq.s32.totalorder %s13, 0
    %p68 = por %p66, %p67
    %p69 = scmp.ne.s32.totalorder %s61, %s63
    %p70 = scmp.eq.s32.totalorder %s18, 1
    %p71 = por %p69, %p70
    %p72 = scmp.ne.s32.totalorder %s63, %s64
    %p73 = scmp.eq.s32.totalorder %s18, 0
    %p74 = por %p72, %p73
    %p75 = scmp.ne.s32.totalorder %s63, %s64
    %p76 = scmp.eq.s32.totalorder %s19, 1
    %p77 = por %p75, %p76
    %p79 = scmp.ne.s32.totalorder %s64, %s78
    %p80 = scmp.eq.s32.totalorder %s19, 0
    %p81 = por %p79, %p80
    %s83 = sadd.s32 %s82, 1
    %p86 = scmp.eq.s32.totalorder %s13, 1
    %p87 = scmp.ne.s32.totalorder %s82, %s84
    %p88 = scmp.eq.s32.totalorder %s13, 0
    %p89 = por %p87, %p88
    %p90 = scmp.ne.s32.totalorder %s82, %s84
    %p91 = scmp.eq.s32.totalorder %s18, 1
    %p92 = por %p90, %p91
    %p93 = scmp.ne.s32.totalorder %s84, %s85
    %p94 = scmp.eq.s32.totalorder %s18, 0
    %p95 = por %p93, %p94
    %p96 = scmp.ne.s32.totalorder %s84, %s85
    %p97 = scmp.eq.s32.totalorder %s19, 1
    %p98 = por %p96, %p97
    %p100 = scmp.ne.s32.totalorder %s85, %s99
    %p101 = scmp.eq.s32.totalorder %s19, 0
    %p102 = por %p100, %p101
    %s104 = sadd.s32 %s103, 1
    %p107 = scmp.eq.s32.totalorder %s13, 1
    %p108 = scmp.ne.s32.totalorder %s103, %s105
    %p109 = scmp.eq.s32.totalorder %s13, 0
    %p110 = por %p108, %p109
    %p111 = scmp.ne.s32.totalorder %s103, %s105
    %p112 = scmp.eq.s32.totalorder %s18, 1
    %p113 = por %p111, %p112
    %p114 = scmp.ne.s32.totalorder %s105, %s106
    %p115 = scmp.eq.s32.totalorder %s18, 0
    %p116 = por %p114, %p115
    %p117 = scmp.ne.s32.totalorder %s105, %s106
    %p118 = scmp.eq.s32.totalorder %s19, 1
    %p119 = por %p117, %p118
    %p121 = scmp.ne.s32.totalorder %s106, %s120
    %p122 = scmp.eq.s32.totalorder %s19, 0
    %p123 = por %p121, %p122
    %s125 = sadd.s32 %s124, 1
    %p128 = scmp.eq.s32.totalorder %s13, 1
    %p129 = scmp.ne.s32.totalorder %s124, %s126
    %p130 = scmp.eq.s32.totalorder %s13, 0
    %p131 = por %p129, %p130
    %p132 = scmp.ne.s32.totalorder %s124, %s126
    %p133 = scmp.eq.s32.totalorder %s18, 1
    %p134 = por %p132, %p133
    %p135 = scmp.ne.s32.totalorder %s126, %s127
    %p136 = scmp.eq.s32.totalorder %s18, 0
    %p137 = por %p135, %p136
    %p138 = scmp.ne.s32.totalorder %s126, %s127
    %p139 = scmp.eq.s32.totalorder %s19, 1
    %p140 = por %p138, %p139
    %p142 = scmp.ne.s32.totalorder %s127, %s141
    %p143 = scmp.eq.s32.totalorder %s19, 0
    %p144 = por %p142, %p143
    %s146 = sadd.s32 %s145, 1
    %p149 = scmp.eq.s32.totalorder %s13, 1
    %p150 = scmp.ne.s32.totalorder %s145, %s147
    %p151 = scmp.eq.s32.totalorder %s13, 0
    %p152 = por %p150, %p151
    %p153 = scmp.ne.s32.totalorder %s145, %s147
    %p154 = scmp.eq.s32.totalorder %s18, 1
    %p155 = por %p153, %p154
    %p156 = scmp.ne.s32.totalorder %s147, %s148
    %p157 = scmp.eq.s32.totalorder %s18, 0
    %p158 = por %p156, %p157
    %p159 = scmp.ne.s32.totalorder %s147, %s148
    %p160 = scmp.eq.s32.totalorder %s19, 1
    %p161 = por %p159, %p160
    %p163 = scmp.ne.s32.totalorder %s148, %s162
    %p164 = scmp.eq.s32.totalorder %s19, 0
    %p165 = por %p163, %p164
    %s167 = sadd.s32 %s166, 1
    %p170 = scmp.eq.s32.totalorder %s13, 1
    %p171 = scmp.ne.s32.totalorder %s166, %s168
    %p172 = scmp.eq.s32.totalorder %s13, 0
    %p173 = por %p171, %p172
    %p174 = scmp.ne.s32.totalorder %s166, %s168
    %p175 = scmp.eq.s32.totalorder %s18, 1
    %p176 = por %p174, %p175
    %p177 = scmp.ne.s32.totalorder %s168, %s169
    %p178 = scmp.eq.s32.totalorder %s18, 0
    %p179 = por %p177, %p178
    %p180 = scmp.ne.s32.totalorder %s168, %s169
    %p181 = scmp.eq.s32.totalorder %s19, 1
    %p182 = por %p180, %p181
    %p184 = scmp.ne.s32.totalorder %s169, %s183
    %p185 = scmp.eq.s32.totalorder %s19, 0
    %p186 = por %p184, %p185
    %s187 = ssub.s32 %s20, %s32
    %s188 = ssub.s32 %s21, %s28
    %s189 = sor.u32 %s187, %s188
    %p190 = scmp.eq.s32.totalorder %s189, 0
    %s192 = sadd.s32 %s191, 1
    %s193 = scalar_select %p190, %s191, %s192
    %p196 = pneg %p190
    %p197 = scmp.eq.s32.totalorder %s13, 1
    %p198 = por %p196, %p197
    %p199 = scmp.ne.s32.totalorder %s191, %s194
    %p200 = scmp.eq.s32.totalorder %s13, 0
    %p201 = por %p199, %p200
    %p202 = scmp.ne.s32.totalorder %s191, %s194
    %p203 = scmp.eq.s32.totalorder %s18, 1
    %p204 = por %p202, %p203
    %p205 = scmp.ne.s32.totalorder %s194, %s195
    %p206 = scmp.eq.s32.totalorder %s18, 0
    %p207 = por %p205, %p206
    %p208 = scmp.ne.s32.totalorder %s194, %s195
    %p209 = scmp.eq.s32.totalorder %s19, 1
    %p210 = por %p208, %p209
    %p212 = scmp.ne.s32.totalorder %s195, %s211
    %p213 = scmp.eq.s32.totalorder %s19, 0
    %p214 = por %p212, %p213
    %p215 = scmp.le.s32.totalorder 1, %s13
    %p216 = scmp.lt.s32.totalorder %s13, 3
    %p217 = pnand %p215, %p216
    %p218 = pneg %p217
    // Predicated region
    $region9: #{pixel_discriminator.1} parent=5 // pred_check
      _
    $region10: #{pixel_discriminator.1} parent=5 // pred_check_branch
      %220 = sbr.rel (%p217) target = $region12
    $region11: #{pixel_discriminator.1} parent=5 // pred_region
      %s221 = ssub.s32 %s13, 1
      // Predicated region
      $region13: #{pixel_discriminator.1} parent=11 // pred_check
        %p222 = pneg %p74
      $region14: #{pixel_discriminator.1} parent=11 // pred_check_branch
        %224 = sbr.rel (%p222) target = $region16
      $region15: #{pixel_discriminator.1} parent=11 // pred_region
        _
      $region16: #{pixel_discriminator.1} parent=11 // pred_fallthru
        _
      // Predicated region
      $region17: #{pixel_discriminator.1} parent=11 // pred_check
        %p225 = pneg %p95
      $region18: #{pixel_discriminator.1} parent=11 // pred_check_branch
        %227 = sbr.rel (%p225) target = $region20
      $region19: #{pixel_discriminator.1} parent=11 // pred_region
        _
      $region20: #{pixel_discriminator.1} parent=11 // pred_fallthru
        _
      // Predicated region
      $region21: #{pixel_discriminator.1} parent=11 // pred_check
        %p228 = pneg %p116
      $region22: #{pixel_discriminator.1} parent=11 // pred_check_branch
        %230 = sbr.rel (%p228) target = $region24
      $region23: #{pixel_discriminator.1} parent=11 // pred_region
        _
      $region24: #{pixel_discriminator.1} parent=11 // pred_fallthru
        _
      // Predicated region
      $region25: #{pixel_discriminator.1} parent=11 // pred_check
        %p231 = pneg %p137
      $region26: #{pixel_discriminator.1} parent=11 // pred_check_branch
        %233 = sbr.rel (%p231) target = $region28
      $region27: #{pixel_discriminator.1} parent=11 // pred_region
        _
      $region28: #{pixel_discriminator.1} parent=11 // pred_fallthru
        _
      // Predicated region
      $region29: #{pixel_discriminator.1} parent=11 // pred_check
        %p234 = pneg %p158
      $region30: #{pixel_discriminator.1} parent=11 // pred_check_branch
        %236 = sbr.rel (%p234) target = $region32
      $region31: #{pixel_discriminator.1} parent=11 // pred_region
        _
      $region32: #{pixel_discriminator.1} parent=11 // pred_fallthru
        _
      // Predicated region
      $region33: #{pixel_discriminator.1} parent=11 // pred_check
        %p237 = pneg %p179
      $region34: #{pixel_discriminator.1} parent=11 // pred_check_branch
        %239 = sbr.rel (%p237) target = $region36
      $region35: #{pixel_discriminator.1} parent=11 // pred_region
        _
      $region36: #{pixel_discriminator.1} parent=11 // pred_fallthru
        _
    $region12: #{pixel_discriminator.1} parent=5 // pred_fallthru
      _
    %p240 = scmp.lt.s32.totalorder %s13, 2
    // Predicated region
    $region37: #{pixel_discriminator.1} parent=5 // pred_check
      %p241 = pneg %p240
    $region38: #{pixel_discriminator.1} parent=5 // pred_check_branch
      %243 = sbr.rel (%p241) target = $region40
    $region39: #{pixel_discriminator.1} parent=5 // pred_region
      // Predicated region
      $region41: #{pixel_discriminator.1} parent=39 // pred_check
        %p244 = pneg %p47
      $region42: #{pixel_discriminator.1} parent=39 // pred_check_branch
        %246 = sbr.rel (%p244) target = $region44
      $region43: #{pixel_discriminator.1} parent=39 // pred_region
        %s247 = smul.u32 2, %s21
        %p248 = scmp.lt.s32.totalorder %s20, 1
        %s249 = scalar_select %p248, %s20, 1
        %p250 = scmp.lt.s32.totalorder %s247, 1
        %s251 = scalar_select %p250, %s247, 1
        %s252 = smul.addr %s249, 2
        %s253 = sadd.s32 %s251, %s252
        %s254 = smul.addr %s253, 4
        %s255 = scalar_lea.vmem %s0, %s254
        %s256 = smul.u32 2, %s21
      $region44: #{pixel_discriminator.1} parent=39 // pred_fallthru
        _
    $region40: #{pixel_discriminator.1} parent=5 // pred_fallthru
      _
    %p257 = scmp.le.s32.totalorder 1, %s13
    %p258 = scmp.lt.s32.totalorder %s13, 3
    %p259 = pnand %p257, %p258
    %p260 = pneg %p259
    // Predicated region
    $region45: #{pixel_discriminator.1} parent=5 // pred_check
      _
    $region46: #{pixel_discriminator.1} parent=5 // pred_check_branch
      %262 = sbr.rel (%p259) target = $region48
    $region47: #{pixel_discriminator.1} parent=5 // pred_region
      %s263 = ssub.s32 %s13, 1
      %s264 = smul.u32 2, %s23
      %p265 = scmp.lt.s32.totalorder %s22, 1
      %s266 = scalar_select %p265, %s22, 1
      %p267 = scmp.lt.s32.totalorder %s264, 1
      %s268 = scalar_select %p267, %s264, 1
      %s269 = smul.addr %s266, 2
      %s270 = sadd.s32 %s268, %s269
      %s271 = smul.addr %s270, 4
      %s272 = scalar_lea.vmem %s0, %s271
      %p273 = pneg %p53
      %p274 = pneg %p50
      %p275 = pneg %p74
      %p276 = pneg %p71
      %p277 = pneg %p95
      %p278 = pneg %p92
      %p279 = pneg %p116
      %p280 = pneg %p113
      %p281 = pneg %p137
      %p282 = pneg %p134
      %p283 = pneg %p158
      %p284 = pneg %p155
      %p285 = pneg %p179
      %p286 = pneg %p176
      %p287 = pneg %p207
      %p288 = pneg %p204
      %s289 = smul.u32 2, %s23
      %p290 = scmp.lt.s32.totalorder %s22, 1
      %s291 = scalar_select %p290, %s22, 1
      %p292 = scmp.lt.s32.totalorder %s289, 1
      %s293 = scalar_select %p292, %s289, 1
      %s294 = smul.addr %s291, 2
      %s295 = sadd.s32 %s293, %s294
      %s296 = scalar_lea.vmem %s7, %s295
      %s297 = smul.u32 2, %s23
      %p298 = scmp.lt.s32.totalorder %s22, 1
      %s299 = scalar_select %p298, %s22, 1
      %p300 = scmp.lt.s32.totalorder %s297, 1
      %s301 = scalar_select %p300, %s297, 1
      %s302 = smul.addr %s299, 2
      %s303 = sadd.s32 %s301, %s302
      %s304 = smul.addr %s303, 4
      %s305 = scalar_lea.vmem %s0, %s304
      %s306 = smul.u32 2, %s23
      %s307 = smul.u32 2, %s23
      %p308 = scmp.lt.s32.totalorder %s22, 1
      %s309 = scalar_select %p308, %s22, 1
      %p310 = scmp.lt.s32.totalorder %s307, 1
      %s311 = scalar_select %p310, %s307, 1
      %s312 = smul.addr %s309, 2
      %s313 = sadd.s32 %s311, %s312
      %s314 = scalar_lea.vmem %s7, %s313
      %s315 = smul.u32 2, %s23
      %v317 = vld [vmem:[%s305] sm:$0xff]
      %v319 = vcombine.high %v317, %v317
      %v321 = vpack.c.bf16 %v317, %v317
      %v322 = vpack.c.bf16 %v319, %v319
      %v323 = vld [vmem:[%s1] sm:$0xf]
      %v324 = vld [vmem:[%s1 + $0x4] sm:$0xf]
      %v325 = vld [vmem:[%s1 + $0x8] sm:$0xf]
      %v326 = vld [vmem:[%s1 + $0xc] sm:$0xf]
      %v327 = vld [vmem:[%s1 + $0x10] sm:$0xf]
      %v328 = vld [vmem:[%s1 + $0x14] sm:$0xf]
      %v329 = vld [vmem:[%s1 + $0x18] sm:$0xf]
      %v330 = vld [vmem:[%s1 + $0x1c] sm:$0xf]
      %v331 = vld [vmem:[%s2] sm:$0xff]
      %v332 = vld [vmem:[%s2 + $0x8] sm:$0xff]
      %v333 = vld [vmem:[%s2 + $0x10] sm:$0xff]
      %v334 = vld [vmem:[%s2 + $0x18] sm:$0xff]
      %v335 = vld [vmem:[%s2 + $0x20] sm:$0xff]
      %v336 = vld [vmem:[%s2 + $0x28] sm:$0xff]
      %v337 = vld [vmem:[%s2 + $0x30] sm:$0xff]
      %v338 = vld [vmem:[%s2 + $0x38] sm:$0xff]
      %340 = vset.pattern.permute.xlu0 0
      %341 = vperm.xlu0 %340, %v331
      %v342 = vpop.permute.xlu0 %341
      %345 = vset.pattern.permute.xlu0 0
      %346 = vperm.xlu0 %345, %v332
      %v347 = vpop.permute.xlu0 %346
      %350 = vset.pattern.permute.xlu0 0
      %351 = vperm.xlu0 %350, %v333
      %v352 = vpop.permute.xlu0 %351
      %355 = vset.pattern.permute.xlu0 0
      %356 = vperm.xlu0 %355, %v334
      %v357 = vpop.permute.xlu0 %356
      %360 = vset.pattern.permute.xlu0 0
      %361 = vperm.xlu0 %360, %v335
      %v362 = vpop.permute.xlu0 %361
      %365 = vset.pattern.permute.xlu0 0
      %366 = vperm.xlu0 %365, %v336
      %v367 = vpop.permute.xlu0 %366
      %370 = vset.pattern.permute.xlu0 0
      %371 = vperm.xlu0 %370, %v337
      %v372 = vpop.permute.xlu0 %371
      %375 = vset.pattern.permute.xlu0 0
      %376 = vperm.xlu0 %375, %v338
      %v377 = vpop.permute.xlu0 %376
      %v387 = vunpack.c.l.b16 %v323
      %v388 = vunpack.c.l.b16 %v324
      %v389 = vunpack.c.l.b16 %v325
      %v390 = vunpack.c.l.b16 %v326
      %v391 = vunpack.c.l.b16 %v327
      %v392 = vunpack.c.l.b16 %v328
      %v393 = vunpack.c.l.b16 %v329
      %v394 = vunpack.c.l.b16 %v330
      %v395 = vpack.c.b16 %v388, %v387
      %v396 = vpack.c.b16 %v390, %v389
      %v397 = vpack.c.b16 %v392, %v391
      %v398 = vpack.c.b16 %v394, %v393
      %vm399 = vcmask 31744
      %v401 = vsel %vm399, %v395, 0
      %v404 = vsel %vm399, %v396, 0
      %v407 = vsel %vm399, %v397, 0
      %v410 = vsel %vm399, %v398, 0
      %vm412 = vcmask 1041408
      %v414 = vsel %vm412, %v321, 0
      %v417 = vsel %vm412, %v322, 0
      %419 = vmatprep.subr.bf16.mxu0 %v417
      %420 = vmatpush1.bf16.msra.mxu0 %v414
      %421 = vmatprep.subr.bf16.mxu0 0
      %422 = vmatpush1.bf16.msra.mxu0 0
      %423 = vmatprep.subr.bf16.mxu0 0
      %424 = vmatpush1.bf16.msra.mxu0 0
      %425 = vmatprep.subr.bf16.mxu0 0
      %426 = vmatpush1.bf16.msra.mxu0 0
      %427 = vmatprep.subr.bf16.mxu0 0
      %428 = vmatpush1.bf16.msra.mxu0 0
      %429 = vmatprep.subr.bf16.mxu0 0
      %430 = vmatpush1.bf16.msra.mxu0 0
      %431 = vmatprep.subr.bf16.mxu0 0
      %432 = vmatpush1.bf16.msra.mxu0 0
      %433 = vmatprep.subr.bf16.mxu0 0
      %434 = vmatpush1.bf16.msra.mxu0 0
      %435 = vmatprep.subr.bf16.mxu0 0
      %436 = vmatpush1.bf16.msra.mxu0 0
      %437 = vmatprep.subr.bf16.mxu0 0
      %438 = vmatpush1.bf16.msra.mxu0 0
      %439 = vmatprep.subr.bf16.mxu0 0
      %440 = vmatpush1.bf16.msra.mxu0 0
      %441 = vmatprep.subr.bf16.mxu0 0
      %442 = vmatpush1.bf16.msra.mxu0 0
      %443 = vmatprep.subr.bf16.mxu0 0
      %444 = vmatpush1.bf16.msra.mxu0 0
      %445 = vmatprep.subr.bf16.mxu0 0
      %446 = vmatpush1.bf16.msra.mxu0 0
      %447 = vmatprep.subr.bf16.mxu0 0
      %448 = vmatpush1.bf16.msra.mxu0 0
      %449 = vmatprep.subr.bf16.mxu0 0
      %450 = vmatpush1.bf16.msra.mxu0 0
      %451 = vmatprep.mubr.bf16.mxu0 0
      %452 = vmatmul.mubr.bf16.gmra.mrb[0].mxu0 %v401
      %v453 = vpop.f32.mrb[0].mxu0
      %v454 = vadd.f32 %v342, %v453
      %v455 = vpop.f32.mrb[0].mxu0
      %v456 = vadd.f32 %v342, %v455
      %v457 = vpop.f32.mrb[0].mxu0
      %v458 = vadd.f32 %v347, %v457
      %v459 = vpop.f32.mrb[0].mxu0
      %v460 = vadd.f32 %v347, %v459
      %461 = vmatprep.mubr.bf16.mxu0 0
      %462 = vmatmul.mubr.bf16.gmra.mrb[0].mxu0 %v404
      %v463 = vpop.f32.mrb[0].mxu0
      %v464 = vadd.f32 %v352, %v463
      %v465 = vpop.f32.mrb[0].mxu0
      %v466 = vadd.f32 %v352, %v465
      %v467 = vpop.f32.mrb[0].mxu0
      %v468 = vadd.f32 %v357, %v467
      %v469 = vpop.f32.mrb[0].mxu0
      %v470 = vadd.f32 %v357, %v469
      %471 = vmatprep.mubr.bf16.mxu0 0
      %472 = vmatmul.mubr.bf16.gmra.mrb[0].mxu0 %v407
      %v473 = vpop.f32.mrb[0].mxu0
      %v474 = vadd.f32 %v362, %v473
      %v475 = vpop.f32.mrb[0].mxu0
      %v476 = vadd.f32 %v362, %v475
      %v477 = vpop.f32.mrb[0].mxu0
      %v478 = vadd.f32 %v367, %v477
      %v479 = vpop.f32.mrb[0].mxu0
      %v480 = vadd.f32 %v367, %v479
      %481 = vmatprep.mubr.bf16.mxu0 0
      %482 = vmatmul.mubr.bf16.gmra.mrb[0].mxu0 %v410
      %v483 = vpop.f32.mrb[0].mxu0
      %v484 = vadd.f32 %v372, %v483
      %v485 = vpop.f32.mrb[0].mxu0
      %v486 = vadd.f32 %v372, %v485
      %v487 = vpop.f32.mrb[0].mxu0
      %v488 = vadd.f32 %v377, %v487
      %v489 = vpop.f32.mrb[0].mxu0
      %v490 = vadd.f32 %v377, %v489
      %491 = vdwg.mxu0
      %v492 = vmul.f32 %v454, 0.2
      %v493 = vmul.f32 %v456, 0.2
      %v494 = vmul.f32 %v458, 0.2
      %v495 = vmul.f32 %v460, 0.2
      %v496 = vmul.f32 %v464, 0.2
      %v497 = vmul.f32 %v466, 0.2
      %v498 = vmul.f32 %v468, 0.2
      %v499 = vmul.f32 %v470, 0.2
      %v500 = vmul.f32 %v474, 0.2
      %v501 = vmul.f32 %v476, 0.2
      %v502 = vmul.f32 %v478, 0.2
      %v503 = vmul.f32 %v480, 0.2
      %v504 = vmul.f32 %v484, 0.2
      %v505 = vmul.f32 %v486, 0.2
      %v506 = vmul.f32 %v488, 0.2
      %v507 = vmul.f32 %v490, 0.2
      %v508 = vmax.f32 %v454, %v492
      %v509 = vmax.f32 %v456, %v493
      %v510 = vmax.f32 %v458, %v494
      %v511 = vmax.f32 %v460, %v495
      %v512 = vmax.f32 %v464, %v496
      %v513 = vmax.f32 %v466, %v497
      %v514 = vmax.f32 %v468, %v498
      %v515 = vmax.f32 %v470, %v499
      %v516 = vmax.f32 %v474, %v500
      %v517 = vmax.f32 %v476, %v501
      %v518 = vmax.f32 %v478, %v502
      %v519 = vmax.f32 %v480, %v503
      %v520 = vmax.f32 %v484, %v504
      %v521 = vmax.f32 %v486, %v505
      %v522 = vmax.f32 %v488, %v506
      %v523 = vmax.f32 %v490, %v507
      %v524 = vld [vmem:[%s3] sm:$0xf]
      %v525 = vld [vmem:[%s3 + $0x4] sm:$0xf]
      %v526 = vld [vmem:[%s3 + $0x8] sm:$0xf]
      %v527 = vld [vmem:[%s3 + $0xc] sm:$0xf]
      %v528 = vld [vmem:[%s3 + $0x10] sm:$0xf]
      %v529 = vld [vmem:[%s3 + $0x14] sm:$0xf]
      %v530 = vld [vmem:[%s3 + $0x18] sm:$0xf]
      %v531 = vld [vmem:[%s3 + $0x1c] sm:$0xf]
      %v532 = vld [vmem:[%s3 + $0x20] sm:$0xf]
      %v533 = vld [vmem:[%s3 + $0x24] sm:$0xf]
      %v534 = vld [vmem:[%s3 + $0x28] sm:$0xf]
      %v535 = vld [vmem:[%s3 + $0x2c] sm:$0xf]
      %v536 = vld [vmem:[%s3 + $0x30] sm:$0xf]
      %v537 = vld [vmem:[%s3 + $0x34] sm:$0xf]
      %v538 = vld [vmem:[%s3 + $0x38] sm:$0xf]
      %v539 = vld [vmem:[%s3 + $0x3c] sm:$0xf]
      %v540 = vpack.c.bf16 %v510, %v508
      %v541 = vpack.c.bf16 %v511, %v509
      %v542 = vpack.c.bf16 %v514, %v512
      %v543 = vpack.c.bf16 %v515, %v513
      %v544 = vpack.c.bf16 %v518, %v516
      %v545 = vpack.c.bf16 %v519, %v517
      %v546 = vpack.c.bf16 %v522, %v520
      %v547 = vpack.c.bf16 %v523, %v521
      %v564 = vunpack.c.l.b16 %v524
      %v565 = vunpack.c.l.b16 %v525
      %v566 = vunpack.c.l.b16 %v526
      %v567 = vunpack.c.l.b16 %v527
      %v568 = vunpack.c.l.b16 %v528
      %v569 = vunpack.c.l.b16 %v529
      %v570 = vunpack.c.l.b16 %v530
      %v571 = vunpack.c.l.b16 %v531
      %v572 = vunpack.c.l.b16 %v532
      %v573 = vunpack.c.l.b16 %v533
      %v574 = vunpack.c.l.b16 %v534
      %v575 = vunpack.c.l.b16 %v535
      %v576 = vunpack.c.l.b16 %v536
      %v577 = vunpack.c.l.b16 %v537
      %v578 = vunpack.c.l.b16 %v538
      %v579 = vunpack.c.l.b16 %v539
      %v580 = vpack.c.b16 %v565, %v564
      %v581 = vpack.c.b16 %v567, %v566
      %v582 = vpack.c.b16 %v569, %v568
      %v583 = vpack.c.b16 %v571, %v570
      %v584 = vpack.c.b16 %v573, %v572
      %v585 = vpack.c.b16 %v575, %v574
      %v586 = vpack.c.b16 %v577, %v576
      %v587 = vpack.c.b16 %v579, %v578
      %vm588 = vcmask 523264
      %v590 = vsel %vm588, %v580, 0
      %v593 = vsel %vm588, %v581, 0
      %v596 = vsel %vm588, %v582, 0
      %v599 = vsel %vm588, %v583, 0
      %v602 = vsel %vm588, %v584, 0
      %v605 = vsel %vm588, %v585, 0
      %v608 = vsel %vm588, %v586, 0
      %v611 = vsel %vm588, %v587, 0
      %613 = vmatprep.subr.bf16.mxu0 %v541
      %614 = vmatpush1.bf16.msra.mxu0 %v540
      %615 = vmatprep.subr.bf16.mxu0 %v543
      %616 = vmatpush1.bf16.msra.mxu0 %v542
      %617 = vmatprep.subr.bf16.mxu0 %v545
      %618 = vmatpush1.bf16.msra.mxu0 %v544
      %619 = vmatprep.subr.bf16.mxu0 %v547
      %620 = vmatpush1.bf16.msra.mxu0 %v546
      %621 = vmatprep.subr.bf16.mxu0 0
      %622 = vmatpush1.bf16.msra.mxu0 0
      %623 = vmatprep.subr.bf16.mxu0 0
      %624 = vmatpush1.bf16.msra.mxu0 0
      %625 = vmatprep.subr.bf16.mxu0 0
      %626 = vmatpush1.bf16.msra.mxu0 0
      %627 = vmatprep.subr.bf16.mxu0 0
      %628 = vmatpush1.bf16.msra.mxu0 0
      %629 = vmatprep.subr.bf16.mxu0 0
      %630 = vmatpush1.bf16.msra.mxu0 0
      %631 = vmatprep.subr.bf16.mxu0 0
      %632 = vmatpush1.bf16.msra.mxu0 0
      %633 = vmatprep.subr.bf16.mxu0 0
      %634 = vmatpush1.bf16.msra.mxu0 0
      %635 = vmatprep.subr.bf16.mxu0 0
      %636 = vmatpush1.bf16.msra.mxu0 0
      %637 = vmatprep.subr.bf16.mxu0 0
      %638 = vmatpush1.bf16.msra.mxu0 0
      %639 = vmatprep.subr.bf16.mxu0 0
      %640 = vmatpush1.bf16.msra.mxu0 0
      %641 = vmatprep.subr.bf16.mxu0 0
      %642 = vmatpush1.bf16.msra.mxu0 0
      %643 = vmatprep.subr.bf16.mxu0 0
      %644 = vmatpush1.bf16.msra.mxu0 0
      %645 = vmatprep.mubr.bf16.mxu0 0
      %646 = vmatmul.mubr.bf16.gmra.mrb[0].mxu0 %v590
      %v647 = vpop.f32.mrb[0].mxu0
      %v648 = vadd.f32 0.0, %v647
      %v649 = vpop.f32.mrb[0].mxu0
      %v650 = vadd.f32 0.0, %v649
      %v651 = vpop.f32.mrb[0].mxu0
      %v652 = vadd.f32 0.0, %v651
      %v653 = vpop.f32.mrb[0].mxu0
      %v654 = vadd.f32 0.0, %v653
      %655 = vmatprep.mubr.bf16.mxu0 0
      %656 = vmatmul.mubr.bf16.gmra.mrb[0].mxu0 %v593
      %v657 = vpop.f32.mrb[0].mxu0
      %v658 = vadd.f32 0.0, %v657
      %v659 = vpop.f32.mrb[0].mxu0
      %v660 = vadd.f32 0.0, %v659
      %v661 = vpop.f32.mrb[0].mxu0
      %v662 = vadd.f32 0.0, %v661
      %v663 = vpop.f32.mrb[0].mxu0
      %v664 = vadd.f32 0.0, %v663
      %665 = vmatprep.mubr.bf16.mxu0 0
      %666 = vmatmul.mubr.bf16.gmra.mrb[0].mxu0 %v596
      %v667 = vpop.f32.mrb[0].mxu0
      %v668 = vadd.f32 0.0, %v667
      %v669 = vpop.f32.mrb[0].mxu0
      %v670 = vadd.f32 0.0, %v669
      %v671 = vpop.f32.mrb[0].mxu0
      %v672 = vadd.f32 0.0, %v671
      %v673 = vpop.f32.mrb[0].mxu0
      %v674 = vadd.f32 0.0, %v673
      %675 = vmatprep.mubr.bf16.mxu0 0
      %676 = vmatmul.mubr.bf16.gmra.mrb[0].mxu0 %v599
      %v677 = vpop.f32.mrb[0].mxu0
      %v678 = vadd.f32 0.0, %v677
      %v679 = vpop.f32.mrb[0].mxu0
      %v680 = vadd.f32 0.0, %v679
      %v681 = vpop.f32.mrb[0].mxu0
      %v682 = vadd.f32 0.0, %v681
      %v683 = vpop.f32.mrb[0].mxu0
      %v684 = vadd.f32 0.0, %v683
      %685 = vmatprep.mubr.bf16.mxu0 0
      %686 = vmatmul.mubr.bf16.gmra.mrb[0].mxu0 %v602
      %v687 = vpop.f32.mrb[0].mxu0
      %v688 = vadd.f32 0.0, %v687
      %v689 = vpop.f32.mrb[0].mxu0
      %v690 = vadd.f32 0.0, %v689
      %v691 = vpop.f32.mrb[0].mxu0
      %v692 = vadd.f32 0.0, %v691
      %v693 = vpop.f32.mrb[0].mxu0
      %v694 = vadd.f32 0.0, %v693
      %695 = vmatprep.mubr.bf16.mxu0 0
      %696 = vmatmul.mubr.bf16.gmra.mrb[0].mxu0 %v605
      %v697 = vpop.f32.mrb[0].mxu0
      %v698 = vadd.f32 0.0, %v697
      %v699 = vpop.f32.mrb[0].mxu0
      %v700 = vadd.f32 0.0, %v699
      %v701 = vpop.f32.mrb[0].mxu0
      %v702 = vadd.f32 0.0, %v701
      %v703 = vpop.f32.mrb[0].mxu0
      %v704 = vadd.f32 0.0, %v703
      %705 = vmatprep.mubr.bf16.mxu0 0
      %706 = vmatmul.mubr.bf16.gmra.mrb[0].mxu0 %v608
      %v707 = vpop.f32.mrb[0].mxu0
      %v708 = vadd.f32 0.0, %v707
      %v709 = vpop.f32.mrb[0].mxu0
      %v710 = vadd.f32 0.0, %v709
      %v711 = vpop.f32.mrb[0].mxu0
      %v712 = vadd.f32 0.0, %v711
      %v713 = vpop.f32.mrb[0].mxu0
      %v714 = vadd.f32 0.0, %v713
      %715 = vmatprep.mubr.bf16.mxu0 0
      %716 = vmatmul.mubr.bf16.gmra.mrb[0].mxu0 %v611
      %v717 = vpop.f32.mrb[0].mxu0
      %v718 = vadd.f32 0.0, %v717
      %v719 = vpop.f32.mrb[0].mxu0
      %v720 = vadd.f32 0.0, %v719
      %v721 = vpop.f32.mrb[0].mxu0
      %v722 = vadd.f32 0.0, %v721
      %v723 = vpop.f32.mrb[0].mxu0
      %v724 = vadd.f32 0.0, %v723
      %725 = vdwg.mxu0
      %v726 = vld [vmem:[%s4] sm:$0xff]
      %v727 = vld [vmem:[%s4 + $0x8] sm:$0xff]
      %v728 = vld [vmem:[%s4 + $0x10] sm:$0xff]
      %v729 = vld [vmem:[%s4 + $0x18] sm:$0xff]
      %v730 = vld [vmem:[%s4 + $0x20] sm:$0xff]
      %v731 = vld [vmem:[%s4 + $0x28] sm:$0xff]
      %v732 = vld [vmem:[%s4 + $0x30] sm:$0xff]
      %v733 = vld [vmem:[%s4 + $0x38] sm:$0xff]
      %v734 = vld [vmem:[%s4 + $0x40] sm:$0xff]
      %v735 = vld [vmem:[%s4 + $0x48] sm:$0xff]
      %v736 = vld [vmem:[%s4 + $0x50] sm:$0xff]
      %v737 = vld [vmem:[%s4 + $0x58] sm:$0xff]
      %v738 = vld [vmem:[%s4 + $0x60] sm:$0xff]
      %v739 = vld [vmem:[%s4 + $0x68] sm:$0xff]
      %v740 = vld [vmem:[%s4 + $0x70] sm:$0xff]
      %v741 = vld [vmem:[%s4 + $0x78] sm:$0xff]
      %743 = vset.pattern.permute.xlu0 0
      %744 = vperm.xlu0 %743, %v726
      %v745 = vpop.permute.xlu0 %744
      %748 = vset.pattern.permute.xlu0 0
      %749 = vperm.xlu0 %748, %v727
      %v750 = vpop.permute.xlu0 %749
      %753 = vset.pattern.permute.xlu0 0
      %754 = vperm.xlu0 %753, %v728
      %v755 = vpop.permute.xlu0 %754
      %758 = vset.pattern.permute.xlu0 0
      %759 = vperm.xlu0 %758, %v729
      %v760 = vpop.permute.xlu0 %759
      %763 = vset.pattern.permute.xlu0 0
      %764 = vperm.xlu0 %763, %v730
      %v765 = vpop.permute.xlu0 %764
      %768 = vset.pattern.permute.xlu0 0
      %769 = vperm.xlu0 %768, %v731
      %v770 = vpop.permute.xlu0 %769
      %773 = vset.pattern.permute.xlu0 0
      %774 = vperm.xlu0 %773, %v732
      %v775 = vpop.permute.xlu0 %774
      %778 = vset.pattern.permute.xlu0 0
      %779 = vperm.xlu0 %778, %v733
      %v780 = vpop.permute.xlu0 %779
      %783 = vset.pattern.permute.xlu0 0
      %784 = vperm.xlu0 %783, %v734
      %v785 = vpop.permute.xlu0 %784
      %788 = vset.pattern.permute.xlu0 0
      %789 = vperm.xlu0 %788, %v735
      %v790 = vpop.permute.xlu0 %789
      %793 = vset.pattern.permute.xlu0 0
      %794 = vperm.xlu0 %793, %v736
      %v795 = vpop.permute.xlu0 %794
      %798 = vset.pattern.permute.xlu0 0
      %799 = vperm.xlu0 %798, %v737
      %v800 = vpop.permute.xlu0 %799
      %803 = vset.pattern.permute.xlu0 0
      %804 = vperm.xlu0 %803, %v738
      %v805 = vpop.permute.xlu0 %804
      %808 = vset.pattern.permute.xlu0 0
      %809 = vperm.xlu0 %808, %v739
      %v810 = vpop.permute.xlu0 %809
      %813 = vset.pattern.permute.xlu0 0
      %814 = vperm.xlu0 %813, %v740
      %v815 = vpop.permute.xlu0 %814
      %818 = vset.pattern.permute.xlu0 0
      %819 = vperm.xlu0 %818, %v741
      %v820 = vpop.permute.xlu0 %819
      %v822 = vmul.f32 %v648, %v745
      %v823 = vmul.f32 %v650, %v745
      %v824 = vmul.f32 %v652, %v750
      %v825 = vmul.f32 %v654, %v750
      %v826 = vmul.f32 %v658, %v755
      %v827 = vmul.f32 %v660, %v755
      %v828 = vmul.f32 %v662, %v760
      %v829 = vmul.f32 %v664, %v760
      %v830 = vmul.f32 %v668, %v765
      %v831 = vmul.f32 %v670, %v765
      %v832 = vmul.f32 %v672, %v770
      %v833 = vmul.f32 %v674, %v770
      %v834 = vmul.f32 %v678, %v775
      %v835 = vmul.f32 %v680, %v775
      %v836 = vmul.f32 %v682, %v780
      %v837 = vmul.f32 %v684, %v780
      %v838 = vmul.f32 %v688, %v785
      %v839 = vmul.f32 %v690, %v785
      %v840 = vmul.f32 %v692, %v790
      %v841 = vmul.f32 %v694, %v790
      %v842 = vmul.f32 %v698, %v795
      %v843 = vmul.f32 %v700, %v795
      %v844 = vmul.f32 %v702, %v800
      %v845 = vmul.f32 %v704, %v800
      %v846 = vmul.f32 %v708, %v805
      %v847 = vmul.f32 %v710, %v805
      %v848 = vmul.f32 %v712, %v810
      %v849 = vmul.f32 %v714, %v810
      %v850 = vmul.f32 %v718, %v815
      %v851 = vmul.f32 %v720, %v815
      %v852 = vmul.f32 %v722, %v820
      %v853 = vmul.f32 %v724, %v820
      %v854 = vld [vmem:[%s5] sm:$0xff]
      %v855 = vld [vmem:[%s5 + $0x8] sm:$0xff]
      %v856 = vld [vmem:[%s5 + $0x10] sm:$0xff]
      %v857 = vld [vmem:[%s5 + $0x18] sm:$0xff]
      %v858 = vld [vmem:[%s5 + $0x20] sm:$0xff]
      %v859 = vld [vmem:[%s5 + $0x28] sm:$0xff]
      %v860 = vld [vmem:[%s5 + $0x30] sm:$0xff]
      %v861 = vld [vmem:[%s5 + $0x38] sm:$0xff]
      %v862 = vld [vmem:[%s5 + $0x40] sm:$0xff]
      %v863 = vld [vmem:[%s5 + $0x48] sm:$0xff]
      %v864 = vld [vmem:[%s5 + $0x50] sm:$0xff]
      %v865 = vld [vmem:[%s5 + $0x58] sm:$0xff]
      %v866 = vld [vmem:[%s5 + $0x60] sm:$0xff]
      %v867 = vld [vmem:[%s5 + $0x68] sm:$0xff]
      %v868 = vld [vmem:[%s5 + $0x70] sm:$0xff]
      %v869 = vld [vmem:[%s5 + $0x78] sm:$0xff]
      %871 = vset.pattern.permute.xlu0 0
      %872 = vperm.xlu0 %871, %v854
      %v873 = vpop.permute.xlu0 %872
      %876 = vset.pattern.permute.xlu0 0
      %877 = vperm.xlu0 %876, %v855
      %v878 = vpop.permute.xlu0 %877
      %881 = vset.pattern.permute.xlu0 0
      %882 = vperm.xlu0 %881, %v856
      %v883 = vpop.permute.xlu0 %882
      %886 = vset.pattern.permute.xlu0 0
      %887 = vperm.xlu0 %886, %v857
      %v888 = vpop.permute.xlu0 %887
      %891 = vset.pattern.permute.xlu0 0
      %892 = vperm.xlu0 %891, %v858
      %v893 = vpop.permute.xlu0 %892
      %896 = vset.pattern.permute.xlu0 0
      %897 = vperm.xlu0 %896, %v859
      %v898 = vpop.permute.xlu0 %897
      %901 = vset.pattern.permute.xlu0 0
      %902 = vperm.xlu0 %901, %v860
      %v903 = vpop.permute.xlu0 %902
      %906 = vset.pattern.permute.xlu0 0
      %907 = vperm.xlu0 %906, %v861
      %v908 = vpop.permute.xlu0 %907
      %911 = vset.pattern.permute.xlu0 0
      %912 = vperm.xlu0 %911, %v862
      %v913 = vpop.permute.xlu0 %912
      %916 = vset.pattern.permute.xlu0 0
      %917 = vperm.xlu0 %916, %v863
      %v918 = vpop.permute.xlu0 %917
      %921 = vset.pattern.permute.xlu0 0
      %922 = vperm.xlu0 %921, %v864
      %v923 = vpop.permute.xlu0 %922
      %926 = vset.pattern.permute.xlu0 0
      %927 = vperm.xlu0 %926, %v865
      %v928 = vpop.permute.xlu0 %927
      %931 = vset.pattern.permute.xlu0 0
      %932 = vperm.xlu0 %931, %v866
      %v933 = vpop.permute.xlu0 %932
      %936 = vset.pattern.permute.xlu0 0
      %937 = vperm.xlu0 %936, %v867
      %v938 = vpop.permute.xlu0 %937
      %941 = vset.pattern.permute.xlu0 0
      %942 = vperm.xlu0 %941, %v868
      %v943 = vpop.permute.xlu0 %942
      %946 = vset.pattern.permute.xlu0 0
      %947 = vperm.xlu0 %946, %v869
      %v948 = vpop.permute.xlu0 %947
      %v950 = vadd.f32 %v822, %v873
      %v951 = vadd.f32 %v823, %v873
      %v952 = vadd.f32 %v824, %v878
      %v953 = vadd.f32 %v825, %v878
      %v954 = vadd.f32 %v826, %v883
      %v955 = vadd.f32 %v827, %v883
      %v956 = vadd.f32 %v828, %v888
      %v957 = vadd.f32 %v829, %v888
      %v958 = vadd.f32 %v830, %v893
      %v959 = vadd.f32 %v831, %v893
      %v960 = vadd.f32 %v832, %v898
      %v961 = vadd.f32 %v833, %v898
      %v962 = vadd.f32 %v834, %v903
      %v963 = vadd.f32 %v835, %v903
      %v964 = vadd.f32 %v836, %v908
      %v965 = vadd.f32 %v837, %v908
      %v966 = vadd.f32 %v838, %v913
      %v967 = vadd.f32 %v839, %v913
      %v968 = vadd.f32 %v840, %v918
      %v969 = vadd.f32 %v841, %v918
      %v970 = vadd.f32 %v842, %v923
      %v971 = vadd.f32 %v843, %v923
      %v972 = vadd.f32 %v844, %v928
      %v973 = vadd.f32 %v845, %v928
      %v974 = vadd.f32 %v846, %v933
      %v975 = vadd.f32 %v847, %v933
      %v976 = vadd.f32 %v848, %v938
      %v977 = vadd.f32 %v849, %v938
      %v978 = vadd.f32 %v850, %v943
      %v979 = vadd.f32 %v851, %v943
      %v980 = vadd.f32 %v852, %v948
      %v981 = vadd.f32 %v853, %v948
      %v982 = vmul.f32 %v950, 0.2
      %v983 = vmul.f32 %v951, 0.2
      %v984 = vmul.f32 %v952, 0.2
      %v985 = vmul.f32 %v953, 0.2
      %v986 = vmul.f32 %v954, 0.2
      %v987 = vmul.f32 %v955, 0.2
      %v988 = vmul.f32 %v956, 0.2
      %v989 = vmul.f32 %v957, 0.2
      %v990 = vmul.f32 %v958, 0.2
      %v991 = vmul.f32 %v959, 0.2
      %v992 = vmul.f32 %v960, 0.2
      %v993 = vmul.f32 %v961, 0.2
      %v994 = vmul.f32 %v962, 0.2
      %v995 = vmul.f32 %v963, 0.2
      %v996 = vmul.f32 %v964, 0.2
      %v997 = vmul.f32 %v965, 0.2
      %v998 = vmul.f32 %v966, 0.2
      %v999 = vmul.f32 %v967, 0.2
      %v1000 = vmul.f32 %v968, 0.2
      %v1001 = vmul.f32 %v969, 0.2
      %v1002 = vmul.f32 %v970, 0.2
      %v1003 = vmul.f32 %v971, 0.2
      %v1004 = vmul.f32 %v972, 0.2
      %v1005 = vmul.f32 %v973, 0.2
      %v1006 = vmul.f32 %v974, 0.2
      %v1007 = vmul.f32 %v975, 0.2
      %v1008 = vmul.f32 %v976, 0.2
      %v1009 = vmul.f32 %v977, 0.2
      %v1010 = vmul.f32 %v978, 0.2
      %v1011 = vmul.f32 %v979, 0.2
      %v1012 = vmul.f32 %v980, 0.2
      %v1013 = vmul.f32 %v981, 0.2
      %v1014 = vmax.f32 %v950, %v982
      %v1015 = vmax.f32 %v951, %v983
      %v1016 = vmax.f32 %v952, %v984
      %v1017 = vmax.f32 %v953, %v985
      %v1018 = vmax.f32 %v954, %v986
      %v1019 = vmax.f32 %v955, %v987
      %v1020 = vmax.f32 %v956, %v988
      %v1021 = vmax.f32 %v957, %v989
      %v1022 = vmax.f32 %v958, %v990
      %v1023 = vmax.f32 %v959, %v991
      %v1024 = vmax.f32 %v960, %v992
      %v1025 = vmax.f32 %v961, %v993
      %v1026 = vmax.f32 %v962, %v994
      %v1027 = vmax.f32 %v963, %v995
      %v1028 = vmax.f32 %v964, %v996
      %v1029 = vmax.f32 %v965, %v997
      %v1030 = vmax.f32 %v966, %v998
      %v1031 = vmax.f32 %v967, %v999
      %v1032 = vmax.f32 %v968, %v1000
      %v1033 = vmax.f32 %v969, %v1001
      %v1034 = vmax.f32 %v970, %v1002
      %v1035 = vmax.f32 %v971, %v1003
      %v1036 = vmax.f32 %v972, %v1004
      %v1037 = vmax.f32 %v973, %v1005
      %v1038 = vmax.f32 %v974, %v1006
      %v1039 = vmax.f32 %v975, %v1007
      %v1040 = vmax.f32 %v976, %v1008
      %v1041 = vmax.f32 %v977, %v1009
      %v1042 = vmax.f32 %v978, %v1010
      %v1043 = vmax.f32 %v979, %v1011
      %v1044 = vmax.f32 %v980, %v1012
      %v1045 = vmax.f32 %v981, %v1013
      %v1046 = vld [vmem:[%s6] sm:$0x1]
      %v1047 = vpack.c.bf16 %v1016, %v1014
      %v1048 = vpack.c.bf16 %v1017, %v1015
      %v1049 = vpack.c.bf16 %v1020, %v1018
      %v1050 = vpack.c.bf16 %v1021, %v1019
      %v1051 = vpack.c.bf16 %v1024, %v1022
      %v1052 = vpack.c.bf16 %v1025, %v1023
      %v1053 = vpack.c.bf16 %v1028, %v1026
      %v1054 = vpack.c.bf16 %v1029, %v1027
      %v1055 = vpack.c.bf16 %v1032, %v1030
      %v1056 = vpack.c.bf16 %v1033, %v1031
      %v1057 = vpack.c.bf16 %v1036, %v1034
      %v1058 = vpack.c.bf16 %v1037, %v1035
      %v1059 = vpack.c.bf16 %v1040, %v1038
      %v1060 = vpack.c.bf16 %v1041, %v1039
      %v1061 = vpack.c.bf16 %v1044, %v1042
      %v1062 = vpack.c.bf16 %v1045, %v1043
      %1063 = vmatprep.subr.bf16.mxu0 %v1048
      %1064 = vmatpush1.bf16.msra.mxu0 %v1047
      %1065 = vmatprep.subr.bf16.mxu0 %v1050
      %1066 = vmatpush1.bf16.msra.mxu0 %v1049
      %1067 = vmatprep.subr.bf16.mxu0 %v1052
      %1068 = vmatpush1.bf16.msra.mxu0 %v1051
      %1069 = vmatprep.subr.bf16.mxu0 %v1054
      %1070 = vmatpush1.bf16.msra.mxu0 %v1053
      %1071 = vmatprep.subr.bf16.mxu0 %v1056
      %1072 = vmatpush1.bf16.msra.mxu0 %v1055
      %1073 = vmatprep.subr.bf16.mxu0 %v1058
      %1074 = vmatpush1.bf16.msra.mxu0 %v1057
      %1075 = vmatprep.subr.bf16.mxu0 %v1060
      %1076 = vmatpush1.bf16.msra.mxu0 %v1059
      %1077 = vmatprep.subr.bf16.mxu0 %v1062
      %1078 = vmatpush1.bf16.msra.mxu0 %v1061
      %1079 = vmatprep.subr.bf16.mxu0 0
      %1080 = vmatpush1.bf16.msra.mxu0 0
      %1081 = vmatprep.subr.bf16.mxu0 0
      %1082 = vmatpush1.bf16.msra.mxu0 0
      %1083 = vmatprep.subr.bf16.mxu0 0
      %1084 = vmatpush1.bf16.msra.mxu0 0
      %1085 = vmatprep.subr.bf16.mxu0 0
      %1086 = vmatpush1.bf16.msra.mxu0 0
      %1087 = vmatprep.subr.bf16.mxu0 0
      %1088 = vmatpush1.bf16.msra.mxu0 0
      %1089 = vmatprep.subr.bf16.mxu0 0
      %1090 = vmatpush1.bf16.msra.mxu0 0
      %1091 = vmatprep.subr.bf16.mxu0 0
      %1092 = vmatpush1.bf16.msra.mxu0 0
      %1093 = vmatprep.subr.bf16.mxu0 0
      %1094 = vmatpush1.bf16.msra.mxu0 0
      %1095 = vmatprep.mubr.bf16.mxu0 0
      %1096 = vmatmul.mubr.bf16.gmra.mrb[0].mxu0 %v1046
      %v1097 = vpop.f32.mrb[0].mxu0
      %v1098 = vadd.f32 0.0, %v1097
      %v1099 = vpop.f32.mrb[0].mxu0
      %v1100 = vadd.f32 0.0, %v1099
      %v1101 = vpop.f32.mrb[0].mxu0
      %v1102 = vpop.f32.mrb[0].mxu0
      %1103 = vdwg.mxu0
      %v1106 = vcombine.low %v1098, %v1100
      %v1108 = vunpack.c.l.s4 1966171168
      %v1109 = vunpack.c.0.s8 %v1108
      %v1110 = vlaneseq
      %v1111 = vshrl.u32 %v1110, 7
      %v1112 = vsub.s32 %v1109, %v1111
      %v1113 = vrot.slane %v1106, %v1112
      %v1115 = vunpack.c.l.s4 1966171168
      %v1116 = vunpack.c.0.s8 %v1115
      %v1117 = vlaneseq
      %v1118 = vshrl.u32 %v1117, 7
      %v1119 = vsub.s32 %v1116, %v1118
      %v1120 = vrot.slane %v1113, %v1119
      %v1122 = vlaneseq
      %vm1123 = vcmp.ge.s32.totalorder %v1122, 0
      %vm1124 = vcmp.lt.s32.totalorder %v1122, 256
      %vm1125 = vmand %vm1123, %vm1124
      %1126 = vst.msk [vmem:[%s314] sm:$0x3] %vm1125, %v1120
      %s1127 = smul.u32 2, %s23
      %p1128 = scmp.lt.s32.totalorder %s22, 1
      %s1129 = scalar_select %p1128, %s22, 1
      %p1130 = scmp.lt.s32.totalorder %s1127, 1
      %s1131 = scalar_select %p1130, %s1127, 1
      %s1132 = smul.addr %s1129, 2
      %s1133 = sadd.s32 %s1131, %s1132
      %s1134 = scalar_lea.vmem %s7, %s1133
      // Predicated region
      $region49: #{pixel_discriminator.1} parent=47 // pred_check
        %p1135 = pneg %p204
      $region50: #{pixel_discriminator.1} parent=47 // pred_check_branch
        %1137 = sbr.rel (%p1135) target = $region52
      $region51: #{pixel_discriminator.1} parent=47 // pred_region
        %s1138 = smul.u32 2, %s23
      $region52: #{pixel_discriminator.1} parent=47 // pred_fallthru
        _
    $region48: #{pixel_discriminator.1} parent=5 // pred_fallthru
      _
    %p1139 = scmp.le.s32.totalorder 2, %s13
    // Predicated region
    $region53: #{pixel_discriminator.1} parent=5 // pred_check
      %p1140 = pneg %p1139
    $region54: #{pixel_discriminator.1} parent=5 // pred_check_branch
      %1142 = sbr.rel (%p1140) target = $region56
    $region55: #{pixel_discriminator.1} parent=5 // pred_region
      %s1143 = ssub.s32 %s13, 2
      // Predicated region
      $region57: #{pixel_discriminator.1} parent=55 // pred_check
        %p1144 = pneg %p210
      $region58: #{pixel_discriminator.1} parent=55 // pred_check_branch
        %1146 = sbr.rel (%p1144) target = $region60
      $region59: #{pixel_discriminator.1} parent=55 // pred_region
        %s1147 = smul.u32 2, %s25
        %p1148 = scmp.lt.s32.totalorder %s24, 1
        %s1149 = scalar_select %p1148, %s24, 1
        %p1150 = scmp.lt.s32.totalorder %s1147, 1
        %s1151 = scalar_select %p1150, %s1147, 1
        %s1152 = smul.addr %s1149, 2
        %s1153 = sadd.s32 %s1151, %s1152
        %s1154 = scalar_lea.vmem %s7, %s1153
      $region60: #{pixel_discriminator.1} parent=55 // pred_fallthru
        _
    $region56: #{pixel_discriminator.1} parent=5 // pred_fallthru
      _
  $region6: #{pixel_discriminator.1} parent=0 // loop_footer
    %s17 = sadd.s32 1, %s13
  $region7: #{pixel_discriminator.1} parent=0 // loop_footer_branch
    %12 = sbr.rel target = $region3
  $region8: #{pixel_discriminator.1} parent=0 // loop_exit
    _

</llo_original>
